<compile_context>
chip_gen: v7x
topology: tpu7x:2x2x1
jax: 0.10.0
libtpu: 0.0.40
codegen_flags: <defaults>
</compile_context>

<pallas_src>
import jax
import jax.numpy as jnp
from jax.experimental import pallas as pl
from jax.experimental.pallas import tpu as pltpu

IN_FEATURES = 10
OUT_FEATURES = 2
LANE = 128  # TPU lane width; batch tiles must be a multiple of this.


def linear_kernel(w_ref, b_ref, x_ref, o_ref):
    # w_ref: (OUT, IN)   -- constant block (index_map -> (0, 0)), hoisted
    # b_ref: (OUT, 1)    -- constant block
    # x_ref: (IN, TB)    -- batch tile on the lane axis
    # o_ref: (OUT, TB)   -- lane-dense output tile
    acc = jnp.dot(w_ref[...], x_ref[...], preferred_element_type=jnp.float32)
    o_ref[...] = (acc + b_ref[...]).astype(o_ref.dtype)


def simple_model_forward(x, w, b, *, batch_tile=512):
    """y = x @ w.T + b, matching torch.nn.Linear(10, 2).

    x: [B, 10]; w: [2, 10] (PyTorch layout); b: [2].
    """
    batch = x.shape[0]
    # Pad batch up to a multiple of LANE, clamp the tile to the padded batch,
    # then re-pad so padded batch is a multiple of the tile.  VMEM footprint
    # per step is ~2 buffers * (IN + OUT) * TB * 4 B  (< 50 KiB at TB=512),
    # far under the 32 MiB default scoped VMEM and v7x's 64 MiB physical VMEM.
    b_pad = ((batch + LANE - 1) // LANE) * LANE
    tb = min(batch_tile, b_pad)          # multiple of 128 by construction
    b_pad = ((b_pad + tb - 1) // tb) * tb

    x_t = jnp.zeros((IN_FEATURES, b_pad), dtype=x.dtype).at[:, :batch].set(x.T)
    b2d = b.reshape(OUT_FEATURES, 1).astype(x.dtype)

    out_t = pl.pallas_call(
        linear_kernel,
        out_shape=jax.ShapeDtypeStruct((OUT_FEATURES, b_pad), x.dtype),
        grid=(b_pad // tb,),
        in_specs=[
            pl.BlockSpec((OUT_FEATURES, IN_FEATURES), lambda i: (0, 0)),
            pl.BlockSpec((OUT_FEATURES, 1), lambda i: (0, 0)),
            pl.BlockSpec((IN_FEATURES, tb), lambda i: (0, i)),
        ],
        out_specs=pl.BlockSpec((OUT_FEATURES, tb), lambda i: (0, i)),
        compiler_params=pltpu.CompilerParams(
            # Batch tiles are independent -> shard across TCs on v7x;
            # harmless on single-TC v5e/v6e.
            dimension_semantics=("parallel",),
        ),
    )(w.astype(x.dtype), b2d, x_t)

    return out_t[:, :batch].T


if __name__ == "__main__":
    key = jax.random.PRNGKey(0)
    k_x, k_w, k_b, k_x2 = jax.random.split(key, 4)

    # Deterministic parameter init (PyTorch-style uniform bound 1/sqrt(fan_in)).
    bound = 1.0 / float(IN_FEATURES) ** 0.5
    w = jax.random.uniform(k_w, (OUT_FEATURES, IN_FEATURES),
                           minval=-bound, maxval=bound, dtype=jnp.float32)
    b = jax.random.uniform(k_b, (OUT_FEATURES,),
                           minval=-bound, maxval=bound, dtype=jnp.float32)

    # Small shape consistent with the module: batch=2, features=10.
    batch = 2
    x = jax.random.normal(k_x, (batch, IN_FEATURES), dtype=jnp.float32)
    y = simple_model_forward(x, w, b)
    jax.block_until_ready(y)
    y_ref = x @ w.T + b
    assert y.shape == (batch, OUT_FEATURES)
    assert jnp.allclose(y, y_ref, atol=1e-5, rtol=1e-5), "mismatch vs reference (batch=2)"

    # Larger batch to exercise padding + multi-tile grid (>1 grid step).
    batch2 = 600
    x2 = jax.random.normal(k_x2, (batch2, IN_FEATURES), dtype=jnp.float32)
    y2 = simple_model_forward(x2, w, b)
    jax.block_until_ready(y2)
    y2_ref = x2 @ w.T + b
    assert y2.shape == (batch2, OUT_FEATURES)
    assert jnp.allclose(y2, y2_ref, atol=1e-5, rtol=1e-5), "mismatch vs reference (batch=600)"

    print("KERNEL_OK")
</pallas_src>

<mosaic_0001>
module attributes {stable_mosaic.version = 11 : i64} {
  func.func @linear_kernel(%arg0: i32, %arg1: memref<2x10xf32, #tpu.memory_space<vmem>>, %arg2: memref<2x1xf32, #tpu.memory_space<vmem>>, %arg3: memref<10x128xf32, #tpu.memory_space<vmem>>, %arg4: memref<2x128xf32, #tpu.memory_space<vmem>>) attributes {dimension_semantics = [#tpu.dimension_semantics<parallel>], iteration_bounds = array<i64: 1>, scalar_prefetch = 0 : i64, scratch_operands = 0 : i64, tpu.core_type = #tpu.core_type<tc>, window_params = [{pipeline_mode = #tpu.pipeline_mode<synchronous>, transform_indices = @transform_0, window_bounds = array<i64: 2, 10>}, {pipeline_mode = #tpu.pipeline_mode<synchronous>, transform_indices = @transform_1, window_bounds = array<i64: 2, 1>}, {transform_indices = @transform_2, window_bounds = array<i64: 10, 128>}, {transform_indices = @transform_3, window_bounds = array<i64: 2, 128>}]} {
    %c0 = arith.constant 0 : index
    %c0_0 = arith.constant 0 : index
    %0 = vector.load %arg1[%c0, %c0_0] : memref<2x10xf32, #tpu.memory_space<vmem>>, vector<2x10xf32>
    %c0_1 = arith.constant 0 : index
    %c0_2 = arith.constant 0 : index
    %1 = vector.load %arg3[%c0_1, %c0_2] : memref<10x128xf32, #tpu.memory_space<vmem>>, vector<10x128xf32>
    %cst = arith.constant dense<0.000000e+00> : vector<2x128xf32>
    %2 = tpu.matmul %0, %1, %cst {dimension_numbers = #tpu.dot_dimension_numbers<[1], [0], [0], [1], [0, 0, 1, 1], [], []>} : vector<2x10xf32>, vector<10x128xf32>, vector<2x128xf32> -> vector<2x128xf32>
    %c0_3 = arith.constant 0 : index
    %c0_4 = arith.constant 0 : index
    %3 = vector.load %arg2[%c0_3, %c0_4] : memref<2x1xf32, #tpu.memory_space<vmem>>, vector<2x1xf32>
    %4 = vector.broadcast %3 : vector<2x1xf32> to vector<2x128xf32>
    %5 = arith.addf %2, %4 : vector<2x128xf32>
    %c0_5 = arith.constant 0 : index
    %c0_6 = arith.constant 0 : index
    %6 = vector.load %arg4[%c0_5, %c0_6] : memref<2x128xf32, #tpu.memory_space<vmem>>, vector<2x128xf32>
    tpu.vector_store %arg4[%c0_5, %c0_6], %5 {strides = array<i32>} : memref<2x128xf32, #tpu.memory_space<vmem>>, vector<2x128xf32>,
    return
  }
  func.func @transform_0(%arg0: i32) -> (i32, i32) {
    %c0_i32 = arith.constant 0 : i32
    %c0_i32_0 = arith.constant 0 : i32
    %c0_i32_1 = arith.constant 0 : i32
    return %c0_i32, %c0_i32_0 : i32, i32
  }
  func.func @transform_1(%arg0: i32) -> (i32, i32) {
    %c0_i32 = arith.constant 0 : i32
    %c0_i32_0 = arith.constant 0 : i32
    %c0_i32_1 = arith.constant 0 : i32
    return %c0_i32, %c0_i32_0 : i32, i32
  }
  func.func @transform_2(%arg0: i32) -> (i32, i32) {
    %c0_i32 = arith.constant 0 : i32
    %c0_i32_0 = arith.constant 0 : i32
    return %c0_i32, %arg0 : i32, i32
  }
  func.func @transform_3(%arg0: i32) -> (i32, i32) {
    %c0_i32 = arith.constant 0 : i32
    %c0_i32_0 = arith.constant 0 : i32
    return %c0_i32, %arg0 : i32, i32
  }
}

</mosaic_0001>

<llo_original>
// kernel: tpu_custom_call.1
$region0: #{tpu_custom_call.1}
  #allocation0 [shape = 'u32[]', space=smem, size = 0x4, offset = 0x4, fixed_abs, tag = 'smem constant byte address 0x4 - core index']
  #allocation1 [shape = 'u32[144,128]{1,0:T(1,128)}', space=vmem, size = 0x12000, scoped, tag = 'internal scratch']
  %s0 = inlined_call_operand.vmem [shape: f32[2,10], index: 0, kind: input, shape index: {}]
  %s1 = inlined_call_operand.vmem [shape: f32[2,1], index: 1, kind: input, shape index: {}]
  %s2 = inlined_call_operand.hbm [shape: f32[10,128], index: 2, kind: input, shape index: {}]
  %s3 = inlined_call_operand.hbm [shape: f32[2,128], index: 3, kind: output, shape index: {}]
  %s4 = sld [smem:[#allocation0]]
  $region26: #{tpu_custom_call.1} parent=0
    _
  %s6 = ssub.s32 1, %s4
  %s7 = scalar_select 0, %s6, %s4
  $region1: #{tpu_custom_call.1} parent=0
    #allocation2 [shape = 'u8[8192]{0}', space=vmem, size = 0x2000, scoped, tag = 'input window, operand 2, single buffered']
    #allocation3 [shape = 's32[1]{0}', space=sflag, size = 0x4, scoped, tag = 'scoped memory for tpu_custom_call.1']
    #allocation4 [shape = 's32[1]{0}', space=sflag, size = 0x4, scoped, tag = 'scoped memory for tpu_custom_call.1']
    #allocation5 [shape = 'u8[1024]{0}', space=vmem, size = 0x400, scoped, tag = 'output window, operand 0, single buffered']
    %8 = vsyncpa [#allocation3], 0
    %9 = vsyncpa [#allocation4], 0
    // Predicated region
    $region2: #{tpu_custom_call.1} parent=1 // pred_check
      _
    $region3: #{tpu_custom_call.1} parent=1 // pred_check_branch
      %11 = sbr.rel (0) target = $region5
    $region4: #{tpu_custom_call.1} parent=1 // pred_region
      _
    $region5: #{tpu_custom_call.1} parent=1 // pred_fallthru
      _
    // Predicated region
    $region6: #{tpu_custom_call.1} parent=1 // pred_check
      _
    $region7: #{tpu_custom_call.1} parent=1 // pred_check_branch
      %13 = sbr.rel (0) target = $region9
    $region8: #{tpu_custom_call.1} parent=1 // pred_region
      _
    $region9: #{tpu_custom_call.1} parent=1 // pred_fallthru
      _
    // Predicated region
    $region10: #{tpu_custom_call.1} parent=1 // pred_check
      _
    $region11: #{tpu_custom_call.1} parent=1 // pred_check_branch
      %15 = sbr.rel (0) target = $region13
    $region12: #{tpu_custom_call.1} parent=1 // pred_region
      %s17 = ssub.s32 256, 256
      %18 = vsyncadd [#allocation3], %s17
      %s19 = sshll.u32 [#allocation2], 4
      %s20 = int_to_ptr.vmem [resolvable:$true] %s19
      %25 = dma.hbm_to_vmem [thread:$0]  %s2, 256, %s20, [#allocation3], 128, 128, 8
    $region13: #{tpu_custom_call.1} parent=1 // pred_fallthru
      _
    // Predicated region
    $region14: #{tpu_custom_call.1} parent=1 // pred_check
      _
    $region15: #{tpu_custom_call.1} parent=1 // pred_check_branch
      %27 = sbr.rel (0) target = $region17
    $region16: #{tpu_custom_call.1} parent=1 // pred_region
      %28 = dma.done [#allocation3], 256
    $region17: #{tpu_custom_call.1} parent=1 // pred_fallthru
      _
    %v29 = vld [vmem:[%s0] sm:$0x3]
    %v30 = vld [vmem:[#allocation2] sm:$0xff]
    %v31 = vld [vmem:[#allocation2 + $0x8] sm:$0x3]
    %v32 = vld [vmem:[%s1] sm:$0x3]
    %34 = vset.pattern.permute.xlu0 0
    %35 = vperm.xlu0 %34, %v32
    %v36 = vpop.permute.xlu0 %35
    %vm38 = vcmask 80896
    %v40 = vsel %vm38, %v29, 0
    %vm42 = vcmask 1041408
    %v44 = vsel %vm42, %v31, 0
    %46 = vmatprep.subr.mxu0 0.0
    %47 = vmatpush1.msra.mxu0 %v30
    %48 = vmatprep.subr.mxu0 0.0
    %49 = vmatpush1.msra.mxu0 %v44
    %50 = vmatprep.subr.mxu0 0.0
    %51 = vmatpush1.msra.mxu0 0.0
    %52 = vmatprep.subr.mxu0 0.0
    %53 = vmatpush1.msra.mxu0 0.0
    %54 = vmatprep.subr.mxu0 0.0
    %55 = vmatpush1.msra.mxu0 0.0
    %56 = vmatprep.subr.mxu0 0.0
    %57 = vmatpush1.msra.mxu0 0.0
    %58 = vmatprep.subr.mxu0 0.0
    %59 = vmatpush1.msra.mxu0 0.0
    %60 = vmatprep.subr.mxu0 0.0
    %61 = vmatpush1.msra.mxu0 0.0
    %62 = vmatprep.subr.mxu0 0.0
    %63 = vmatpush1.msra.mxu0 0.0
    %64 = vmatprep.subr.mxu0 0.0
    %65 = vmatpush1.msra.mxu0 0.0
    %66 = vmatprep.subr.mxu0 0.0
    %67 = vmatpush1.msra.mxu0 0.0
    %68 = vmatprep.subr.mxu0 0.0
    %69 = vmatpush1.msra.mxu0 0.0
    %70 = vmatprep.subr.mxu0 0.0
    %71 = vmatpush1.msra.mxu0 0.0
    %72 = vmatprep.subr.mxu0 0.0
    %73 = vmatpush1.msra.mxu0 0.0
    %74 = vmatprep.subr.mxu0 0.0
    %75 = vmatpush1.msra.mxu0 0.0
    %76 = vmatprep.subr.mxu0 0.0
    %77 = vmatpush1.msra.mxu0 0.0
    %78 = vmatprep.subr.mxu0 0.0
    %79 = vmatpush1.msra.mxu0 0.0
    %80 = vmatprep.subr.mxu0 0.0
    %81 = vmatpush1.msra.mxu0 0.0
    %82 = vmatprep.subr.mxu0 0.0
    %83 = vmatpush1.msra.mxu0 0.0
    %84 = vmatprep.subr.mxu0 0.0
    %85 = vmatpush1.msra.mxu0 0.0
    %86 = vmatprep.subr.mxu0 0.0
    %87 = vmatpush1.msra.mxu0 0.0
    %88 = vmatprep.subr.mxu0 0.0
    %89 = vmatpush1.msra.mxu0 0.0
    %90 = vmatprep.subr.mxu0 0.0
    %91 = vmatpush1.msra.mxu0 0.0
    %92 = vmatprep.subr.mxu0 0.0
    %93 = vmatpush1.msra.mxu0 0.0
    %94 = vmatprep.subr.mxu0 0.0
    %95 = vmatpush1.msra.mxu0 0.0
    %96 = vmatprep.subr.mxu0 0.0
    %97 = vmatpush1.msra.mxu0 0.0
    %98 = vmatprep.subr.mxu0 0.0
    %99 = vmatpush1.msra.mxu0 0.0
    %100 = vmatprep.subr.mxu0 0.0
    %101 = vmatpush1.msra.mxu0 0.0
    %102 = vmatprep.subr.mxu0 0.0
    %103 = vmatpush1.msra.mxu0 0.0
    %104 = vmatprep.subr.mxu0 0.0
    %105 = vmatpush1.msra.mxu0 0.0
    %106 = vmatprep.subr.mxu0 0.0
    %107 = vmatpush1.msra.mxu0 0.0
    %108 = vmatprep.subr.mxu0 0.0
    %109 = vmatpush1.msra.mxu0 0.0
    %110 = vmatprep.mubr.f32.mxu0 0.0
    %111 = vmatmul.mubr.f32.gmra.mrb[0].mxu0 %v40
    %v112 = vpop.f32.mrb[0].mxu0
    %v113 = vadd.f32 %v36, %v112
    %v114 = vpop.f32.mrb[0].mxu0
    %115 = vdwg.mxu0
    %116 = vst [vmem:[#allocation5] sm:$0x3] %v113
    // Predicated region
    $region18: #{tpu_custom_call.1} parent=1 // pred_check
      _
    $region19: #{tpu_custom_call.1} parent=1 // pred_check_branch
      %118 = sbr.rel (0) target = $region21
    $region20: #{tpu_custom_call.1} parent=1 // pred_region
      %s120 = ssub.s32 32, 32
      %121 = vsyncadd [#allocation4], %s120
      %s123 = sshll.u32 [#allocation5], 4
      %s124 = int_to_ptr.vmem [resolvable:$true] %s123
      %126 = dma.vmem_to_hbm [thread:$0]  %s124, 32, %s3, [#allocation4]
    $region21: #{tpu_custom_call.1} parent=1 // pred_fallthru
      _
    // Predicated region
    $region22: #{tpu_custom_call.1} parent=1 // pred_check
      _
    $region23: #{tpu_custom_call.1} parent=1 // pred_check_branch
      %128 = sbr.rel (0) target = $region25
    $region24: #{tpu_custom_call.1} parent=1 // pred_region
      %129 = dma.done [#allocation4], 32
    $region25: #{tpu_custom_call.1} parent=1 // pred_fallthru
      _
    %130 = vsyncpa [#allocation3], 1
    %131 = vsyncpa [#allocation4], 1

</llo_original>
